<compile_context>
chip_gen: v7x
topology: tpu7x:2x2x1
jax: 0.10.0
libtpu: 0.0.40
codegen_flags: <defaults>
</compile_context>

<pallas_src>
import functools

import jax
import jax.numpy as jnp
from jax import lax
from jax.experimental import pallas as pl
from jax.experimental.pallas import tpu as pltpu

_LANES = 128
_SUBLANES = 8


def _round_up(x, m):
    return (x + m - 1) // m * m


def _vmem_capacity_bytes():
    """Physical per-TensorCore VMEM (v5e/v6e: 128 MiB, v7x: 64 MiB)."""
    try:
        cap = int(getattr(pltpu.get_tpu_info(), "vmem_capacity_bytes", 0) or 0)
        if cap > 0:
            return cap
    except Exception:
        pass
    return 64 * 1024 * 1024  # conservative fallback = v7x per-TC VMEM


def _dc_bd_kernel(logits_ref, target_ref, bound_ref, out_ref, *, C, TR, BND_OFF):
    """One (batch, spatial-tile) grid step.

    logits_ref : (1, C,  TR, 128)  native-dtype logits
    target_ref : (1, 1,  TR, 128)  label map (<= 32-bit dtype)
    bound_ref  : (1, Cb, TR, 128)  native-dtype distance map
                 (Cb = C-1 when background channel dropped; foreground channel
                  c is bound_ref[:, c - BND_OFF])
    out_ref    : (1, 3*C+1, 8, 128) f32 lane-dense partial sums:
                 [0:C]   tp_c     = sum(softmax_c * onehot_c)
                 [C:2C]  sm_sum_c = sum(softmax_c)  (pads included; epilogue fix)
                 [2C:3C] y_cnt_c  = sum(onehot_c)
                 [3C]    bd       = sum_{c>=1}(softmax_c * bound_c)

    The tile is streamed in vreg-sized 8-row chunks inside a fori_loop; one
    (8,128) f32 accumulator per statistic is carried in registers, so no
    full-tile temporaries are materialized and nothing is stored+reloaded.
    """
    n_chunks = TR // _SUBLANES
    zero = jnp.zeros((_SUBLANES, _LANES), jnp.float32)
    init = (tuple(zero for _ in range(C)),   # tp_c
            tuple(zero for _ in range(C)),   # sm_sum_c
            tuple(zero for _ in range(C)),   # y_cnt_c
            zero)                            # bd

    def body(i, carry):
        tp, ss, yc, bd = carry
        r0 = pl.multiple_of(i * _SUBLANES, _SUBLANES)
        rows = pl.ds(r0, _SUBLANES)

        t = target_ref[0, 0, rows, :]                               # (8,128)
        xs = [logits_ref[0, c, rows, :].astype(jnp.float32) for c in range(C)]

        # Channel softmax: pure VPU/EUP work on single-vreg chunks.
        m = xs[0]
        for c in range(1, C):
            m = jnp.maximum(m, xs[c])
        es = [jnp.exp(xs[c] - m) for c in range(C)]
        denom = es[0]
        for c in range(1, C):
            denom = denom + es[c]
        inv = 1.0 / denom

        tp_n, ss_n, yc_n = [], [], []
        bd_n = bd
        for c in range(C):
            sm_c = es[c] * inv
            y_c = (t == c).astype(jnp.float32)
            tp_n.append(tp[c] + sm_c * y_c)
            ss_n.append(ss[c] + sm_c)
            yc_n.append(yc[c] + y_c)
            if c >= 1:
                b_c = bound_ref[0, c - BND_OFF, rows, :].astype(jnp.float32)
                bd_n = bd_n + sm_c * b_c
        return (tuple(tp_n), tuple(ss_n), tuple(yc_n), bd_n)

    tp, ss, yc, bd = lax.fori_loop(0, n_chunks, body, init)

    for c in range(C):
        out_ref[0, c] = tp[c]
        out_ref[0, C + c] = ss[c]
        out_ref[0, 2 * C + c] = yc[c]
    out_ref[0, 3 * C] = bd


def dc_and_bd_loss(net_output, target, bound, *, smooth=1.0, tile_rows=None):
    """Forward of DC_and_BD_loss with default soft_dice_kwargs / bd_kwargs
    (batch_dice=False, do_bg=True, smooth=1.0, square=False, aggregate='sum')."""
    B, C = net_output.shape[:2]
    assert C >= 2, "BDLoss needs at least one foreground channel"
    S = 1
    for d in net_output.shape[2:]:
        S *= d

    if target.ndim == net_output.ndim - 1:          # (B, X, Y, Z) label map
        target = target[:, None]

    # Keep labels <= 32-bit (int64/f64 under x64 would double label traffic and
    # can trip Mosaic); otherwise stream native dtype and compare in-kernel.
    tdt = jnp.dtype(target.dtype)
    if tdt.itemsize > 4 or tdt == jnp.dtype(bool):
        target = target.astype(jnp.int32)

    R = pl.cdiv(S, _LANES)                          # spatial rows of 128 lanes
    R8 = _round_up(R, _SUBLANES)

    vmem_cap = _vmem_capacity_bytes()
    vmem_limit = min(int(0.75 * vmem_cap), 100 * 1024 * 1024)

    if tile_rows is None:
        # Per-generation tile size: ~half the scoped VMEM limit goes to the
        # double-buffered input stream (the kernel body itself keeps only vregs).
        in_isz = jnp.dtype(net_output.dtype).itemsize
        tgt_isz = jnp.dtype(target.dtype).itemsize
        bytes_per_row = _LANES * 2 * (2 * C * in_isz + tgt_isz)
        TR = (vmem_limit // 2) // bytes_per_row
        TR = max(_SUBLANES, min(4096, TR // _SUBLANES * _SUBLANES))
        if B == 1 and R8 > _SUBLANES:
            # Keep >= 2 spatial tiles so both v7x TensorCores get work.
            TR = min(TR, _round_up((R8 + 1) // 2, _SUBLANES))
    else:
        assert tile_rows % _SUBLANES == 0
        TR = tile_rows
    TR = min(TR, R8)

    R_pad = _round_up(R8, TR)
    S_pad = R_pad * _LANES
    NT = R_pad // TR
    NSTAT = 3 * C + 1
    padded = S_pad != S

    logits = net_output.reshape(B, C, S)
    bnd = bound.reshape(B, C, S)
    tgt = target.reshape(B, 1, S)

    # Drop the unused background channel of `bound` only when padding already
    # forces a copy (free); otherwise streaming one wasted channel is cheaper
    # than a dedicated slice-copy pass over the foreground channels.
    slice_bound = padded
    if slice_bound:
        bnd = bnd[:, 1:]
    Cb = C - 1 if slice_bound else C
    bnd_off = 1 if slice_bound else 0

    if padded:
        pw = ((0, 0), (0, 0), (0, S_pad - S))
        # Zero-padded logits => softmax on pads is exactly 1/C (epilogue fix);
        # labels padded with C match no channel; bound pads are 0.
        logits = jnp.pad(logits, pw)
        bnd = jnp.pad(bnd, pw)
        tgt = jnp.pad(tgt, pw, constant_values=C)
    logits = logits.reshape(B, C, R_pad, _LANES)
    bnd = bnd.reshape(B, Cb, R_pad, _LANES)
    tgt = tgt.reshape(B, 1, R_pad, _LANES)

    kernel = functools.partial(_dc_bd_kernel, C=C, TR=TR, BND_OFF=bnd_off)

    grid_spec = pltpu.PrefetchScalarGridSpec(
        num_scalar_prefetch=0,
        grid=(B, NT),
        in_specs=[
            pl.BlockSpec((1, C, TR, _LANES), lambda b, r: (b, 0, r, 0)),   # logits
            pl.BlockSpec((1, 1, TR, _LANES), lambda b, r: (b, 0, r, 0)),   # labels
            pl.BlockSpec((1, Cb, TR, _LANES), lambda b, r: (b, 0, r, 0)),  # bound
        ],
        out_specs=pl.BlockSpec((1, NSTAT, _SUBLANES, _LANES),
                               lambda b, r: (b * NT + r, 0, 0, 0)),
    )

    partials = pl.pallas_call(
        kernel,
        out_shape=jax.ShapeDtypeStruct((B * NT, NSTAT, _SUBLANES, _LANES),
                                       jnp.float32),
        grid_spec=grid_spec,
        compiler_params=pltpu.CompilerParams(
            # Every (b, spatial-tile) step is independent -> both axes parallel
            # (lets the v7x megacore split the spatial axis even for B = 1-2).
            dimension_semantics=("parallel", "parallel"),
            vmem_limit_bytes=int(vmem_limit),
        ),
    )(logits, tgt, bnd)

    # Tiny JAX epilogue: finish reductions, derive fp/fn, assemble both losses.
    sums = partials.sum(axis=(2, 3)).reshape(B, NT, NSTAT).sum(axis=1)  # (B,NSTAT)
    tp = sums[:, 0:C]
    sm_sum = sums[:, C:2 * C]
    y_cnt = sums[:, 2 * C:3 * C]
    bd_tot = sums[:, 3 * C]

    if padded:
        # Zero-filled padded logits give softmax == 1/C exactly on every padded
        # voxel; remove that contribution here instead of masking every tile.
        sm_sum = sm_sum - (S_pad - S) / C

    fp = sm_sum - tp                  # sum(sm*(1-y)) = sum(sm) - sum(sm*y)
    fn = y_cnt - tp                   # sum((1-sm)*y) = sum(y) - sum(sm*y)

    # SoftDiceLoss epilogue (apply_nonlin=softmax, do_bg=True, batch_dice=False)
    dc = (2.0 * tp + smooth) / (2.0 * tp + fp + fn + smooth)
    dc_loss = -jnp.mean(dc)

    # BDLoss epilogue: mean over (B, C-1, X, Y, Z) elements (true S, not padded)
    bd_loss = jnp.sum(bd_tot) / (B * (C - 1) * S)

    return dc_loss + bd_loss


def _reference_loss(net_output, target, bound, smooth=1.0):
    """Pure-JAX reference mirroring the PyTorch module (correctness check)."""
    B, C = net_output.shape[:2]
    x = jax.nn.softmax(net_output.astype(jnp.float32), axis=1)
    y = jax.nn.one_hot(target[:, 0].astype(jnp.int32), C, axis=1,
                       dtype=jnp.float32)
    axes = tuple(range(2, net_output.ndim))
    tp = jnp.sum(x * y, axis=axes)
    fp = jnp.sum(x * (1.0 - y), axis=axes)
    fn = jnp.sum((1.0 - x) * y, axis=axes)
    dc = (2.0 * tp + smooth) / (2.0 * tp + fp + fn + smooth)
    dc_loss = -jnp.mean(dc)
    bd_loss = jnp.mean(x[:, 1:] * bound[:, 1:].astype(jnp.float32))
    return dc_loss + bd_loss


if __name__ == "__main__":
    # S = 16*16*18 = 4608 voxels = 36 rows of 128.  tile_rows=16 runs 3 spatial
    # tiles per batch element including a padded one, exercising the tiled +
    # epilogue-corrected padding path; a second call uses the auto tile size.
    B, C, X, Y, Z = 2, 4, 16, 16, 18
    key = jax.random.PRNGKey(0)
    k1, k2, k3 = jax.random.split(key, 3)

    net_output = jax.random.normal(k1, (B, C, X, Y, Z), dtype=jnp.float32)
    target = jax.random.randint(k2, (B, 1, X, Y, Z), 0, C, dtype=jnp.int32)
    bound = jax.random.normal(k3, (B, C, X, Y, Z), dtype=jnp.float32)

    loss = jax.block_until_ready(
        dc_and_bd_loss(net_output, target, bound, tile_rows=16))
    loss_auto = jax.block_until_ready(
        dc_and_bd_loss(net_output, target, bound))

    ref = jax.block_until_ready(_reference_loss(net_output, target, bound))
    assert jnp.allclose(loss, ref, atol=1e-4, rtol=1e-4), (loss, ref)
    assert jnp.allclose(loss_auto, ref, atol=1e-4, rtol=1e-4), (loss_auto, ref)

    print("KERNEL_OK")
</pallas_src>

<mosaic_0001>
module attributes {stable_mosaic.version = 11 : i64} {
  func.func @_dc_bd_kernel(%arg0: i32, %arg1: i32, %arg2: memref<1x4x16x128xf32, #tpu.memory_space<vmem>>, %arg3: memref<1x1x16x128xi32, #tpu.memory_space<vmem>>, %arg4: memref<1x3x16x128xf32, #tpu.memory_space<vmem>>, %arg5: memref<1x13x8x128xf32, #tpu.memory_space<vmem>>) attributes {dimension_semantics = [#tpu.dimension_semantics<parallel>, #tpu.dimension_semantics<parallel>], iteration_bounds = array<i64: 2, 3>, scalar_prefetch = 0 : i64, scratch_operands = 0 : i64, tpu.core_type = #tpu.core_type<tc>, window_params = [{transform_indices = @transform_0, window_bounds = array<i64: 1, 4, 16, 128>}, {transform_indices = @transform_1, window_bounds = array<i64: 1, 1, 16, 128>}, {transform_indices = @transform_2, window_bounds = array<i64: 1, 3, 16, 128>}, {transform_indices = @transform_3, window_bounds = array<i64: 1, 13, 8, 128>}]} {
    %cst = arith.constant 0.000000e+00 : f32
    %0 = vector.broadcast %cst : f32 to vector<8x128xf32>
    %c0_i32 = arith.constant 0 : i32
    %c2_i32 = arith.constant 2 : i32
    %1 = arith.addi %c0_i32, %c2_i32 : i32
    %c1_i32 = arith.constant 1 : i32
    %2:13 = scf.for %arg6 = %c0_i32 to %1 step %c1_i32 iter_args(%arg7 = %0, %arg8 = %0, %arg9 = %0, %arg10 = %0, %arg11 = %0, %arg12 = %0, %arg13 = %0, %arg14 = %0, %arg15 = %0, %arg16 = %0, %arg17 = %0, %arg18 = %0, %arg19 = %0) -> (vector<8x128xf32>, vector<8x128xf32>, vector<8x128xf32>, vector<8x128xf32>, vector<8x128xf32>, vector<8x128xf32>, vector<8x128xf32>, vector<8x128xf32>, vector<8x128xf32>, vector<8x128xf32>, vector<8x128xf32>, vector<8x128xf32>, vector<8x128xf32>)  : i32 {
      %c8_i32 = arith.constant 8 : i32
      %42 = arith.muli %arg6, %c8_i32 : i32
      %43 = tpu.assume_multiple %42, 8 : i32
      %c0_40 = arith.constant 0 : index
      %c0_41 = arith.constant 0 : index
      %44 = arith.index_cast %43 : i32 to index
      %c0_42 = arith.constant 0 : index
      %45 = vector.load %arg3[%c0_40, %c0_41, %44, %c0_42] : memref<1x1x16x128xi32, #tpu.memory_space<vmem>>, vector<1x1x8x128xi32>
      %46 = vector.shape_cast %45 : vector<1x1x8x128xi32> to vector<8x128xi32>
      %c0_43 = arith.constant 0 : index
      %c0_44 = arith.constant 0 : index
      %47 = arith.index_cast %43 : i32 to index
      %c0_45 = arith.constant 0 : index
      %48 = vector.load %arg2[%c0_43, %c0_44, %47, %c0_45] : memref<1x4x16x128xf32, #tpu.memory_space<vmem>>, vector<1x1x8x128xf32>
      %49 = vector.shape_cast %48 : vector<1x1x8x128xf32> to vector<8x128xf32>
      %c0_46 = arith.constant 0 : index
      %c1_47 = arith.constant 1 : index
      %50 = arith.index_cast %43 : i32 to index
      %c0_48 = arith.constant 0 : index
      %51 = vector.load %arg2[%c0_46, %c1_47, %50, %c0_48] : memref<1x4x16x128xf32, #tpu.memory_space<vmem>>, vector<1x1x8x128xf32>
      %52 = vector.shape_cast %51 : vector<1x1x8x128xf32> to vector<8x128xf32>
      %c0_49 = arith.constant 0 : index
      %c2_50 = arith.constant 2 : index
      %53 = arith.index_cast %43 : i32 to index
      %c0_51 = arith.constant 0 : index
      %54 = vector.load %arg2[%c0_49, %c2_50, %53, %c0_51] : memref<1x4x16x128xf32, #tpu.memory_space<vmem>>, vector<1x1x8x128xf32>
      %55 = vector.shape_cast %54 : vector<1x1x8x128xf32> to vector<8x128xf32>
      %c0_52 = arith.constant 0 : index
      %c3_53 = arith.constant 3 : index
      %56 = arith.index_cast %43 : i32 to index
      %c0_54 = arith.constant 0 : index
      %57 = vector.load %arg2[%c0_52, %c3_53, %56, %c0_54] : memref<1x4x16x128xf32, #tpu.memory_space<vmem>>, vector<1x1x8x128xf32>
      %58 = vector.shape_cast %57 : vector<1x1x8x128xf32> to vector<8x128xf32>
      %59 = arith.maximumf %49, %52 : vector<8x128xf32>
      %60 = arith.maximumf %59, %55 : vector<8x128xf32>
      %61 = arith.maximumf %60, %58 : vector<8x128xf32>
      %62 = arith.subf %49, %61 : vector<8x128xf32>
      %63 = math.exp %62 : vector<8x128xf32>
      %64 = arith.subf %52, %61 : vector<8x128xf32>
      %65 = math.exp %64 : vector<8x128xf32>
      %66 = arith.subf %55, %61 : vector<8x128xf32>
      %67 = math.exp %66 : vector<8x128xf32>
      %68 = arith.subf %58, %61 : vector<8x128xf32>
      %69 = math.exp %68 : vector<8x128xf32>
      %70 = arith.addf %63, %65 : vector<8x128xf32>
      %71 = arith.addf %70, %67 : vector<8x128xf32>
      %72 = arith.addf %71, %69 : vector<8x128xf32>
      %cst_55 = arith.constant 1.000000e+00 : f32
      %73 = vector.broadcast %cst_55 : f32 to vector<8x128xf32>
      %74 = arith.divf %73, %72 : vector<8x128xf32>
      %75 = arith.mulf %63, %74 : vector<8x128xf32>
      %c0_i32_56 = arith.constant 0 : i32
      %76 = vector.broadcast %c0_i32_56 : i32 to vector<8x128xi32>
      %77 = arith.cmpi eq, %46, %76 : vector<8x128xi32>
      %78 = arith.extui %77 : vector<8x128xi1> to vector<8x128xi32>
      %79 = arith.sitofp %78 : vector<8x128xi32> to vector<8x128xf32>
      %80 = arith.mulf %75, %79 : vector<8x128xf32>
      %81 = arith.addf %arg7, %80 : vector<8x128xf32>
      %82 = arith.addf %arg11, %75 : vector<8x128xf32>
      %83 = arith.addf %arg15, %79 : vector<8x128xf32>
      %84 = arith.mulf %65, %74 : vector<8x128xf32>
      %c1_i32_57 = arith.constant 1 : i32
      %85 = vector.broadcast %c1_i32_57 : i32 to vector<8x128xi32>
      %86 = arith.cmpi eq, %46, %85 : vector<8x128xi32>
      %87 = arith.extui %86 : vector<8x128xi1> to vector<8x128xi32>
      %88 = arith.sitofp %87 : vector<8x128xi32> to vector<8x128xf32>
      %89 = arith.mulf %84, %88 : vector<8x128xf32>
      %90 = arith.addf %arg8, %89 : vector<8x128xf32>
      %91 = arith.addf %arg12, %84 : vector<8x128xf32>
      %92 = arith.addf %arg16, %88 : vector<8x128xf32>
      %c0_58 = arith.constant 0 : index
      %c0_59 = arith.constant 0 : index
      %93 = arith.index_cast %43 : i32 to index
      %c0_60 = arith.constant 0 : index
      %94 = vector.load %arg4[%c0_58, %c0_59, %93, %c0_60] : memref<1x3x16x128xf32, #tpu.memory_space<vmem>>, vector<1x1x8x128xf32>
      %95 = vector.shape_cast %94 : vector<1x1x8x128xf32> to vector<8x128xf32>
      %96 = arith.mulf %84, %95 : vector<8x128xf32>
      %97 = arith.addf %arg19, %96 : vector<8x128xf32>
      %98 = arith.mulf %67, %74 : vector<8x128xf32>
      %c2_i32_61 = arith.constant 2 : i32
      %99 = vector.broadcast %c2_i32_61 : i32 to vector<8x128xi32>
      %100 = arith.cmpi eq, %46, %99 : vector<8x128xi32>
      %101 = arith.extui %100 : vector<8x128xi1> to vector<8x128xi32>
      %102 = arith.sitofp %101 : vector<8x128xi32> to vector<8x128xf32>
      %103 = arith.mulf %98, %102 : vector<8x128xf32>
      %104 = arith.addf %arg9, %103 : vector<8x128xf32>
      %105 = arith.addf %arg13, %98 : vector<8x128xf32>
      %106 = arith.addf %arg17, %102 : vector<8x128xf32>
      %c0_62 = arith.constant 0 : index
      %c1_63 = arith.constant 1 : index
      %107 = arith.index_cast %43 : i32 to index
      %c0_64 = arith.constant 0 : index
      %108 = vector.load %arg4[%c0_62, %c1_63, %107, %c0_64] : memref<1x3x16x128xf32, #tpu.memory_space<vmem>>, vector<1x1x8x128xf32>
      %109 = vector.shape_cast %108 : vector<1x1x8x128xf32> to vector<8x128xf32>
      %110 = arith.mulf %98, %109 : vector<8x128xf32>
      %111 = arith.addf %97, %110 : vector<8x128xf32>
      %112 = arith.mulf %69, %74 : vector<8x128xf32>
      %c3_i32 = arith.constant 3 : i32
      %113 = vector.broadcast %c3_i32 : i32 to vector<8x128xi32>
      %114 = arith.cmpi eq, %46, %113 : vector<8x128xi32>
      %115 = arith.extui %114 : vector<8x128xi1> to vector<8x128xi32>
      %116 = arith.sitofp %115 : vector<8x128xi32> to vector<8x128xf32>
      %117 = arith.mulf %112, %116 : vector<8x128xf32>
      %118 = arith.addf %arg10, %117 : vector<8x128xf32>
      %119 = arith.addf %arg14, %112 : vector<8x128xf32>
      %120 = arith.addf %arg18, %116 : vector<8x128xf32>
      %c0_65 = arith.constant 0 : index
      %c2_66 = arith.constant 2 : index
      %121 = arith.index_cast %43 : i32 to index
      %c0_67 = arith.constant 0 : index
      %122 = vector.load %arg4[%c0_65, %c2_66, %121, %c0_67] : memref<1x3x16x128xf32, #tpu.memory_space<vmem>>, vector<1x1x8x128xf32>
      %123 = vector.shape_cast %122 : vector<1x1x8x128xf32> to vector<8x128xf32>
      %124 = arith.mulf %112, %123 : vector<8x128xf32>
      %125 = arith.addf %111, %124 : vector<8x128xf32>
      scf.yield %81, %90, %104, %118, %82, %91, %105, %119, %83, %92, %106, %120, %125 : vector<8x128xf32>, vector<8x128xf32>, vector<8x128xf32>, vector<8x128xf32>, vector<8x128xf32>, vector<8x128xf32>, vector<8x128xf32>, vector<8x128xf32>, vector<8x128xf32>, vector<8x128xf32>, vector<8x128xf32>, vector<8x128xf32>, vector<8x128xf32>
    }
    %c2_i32_0 = arith.constant 2 : i32
    %c0 = arith.constant 0 : index
    %c0_1 = arith.constant 0 : index
    %c0_2 = arith.constant 0 : index
    %c0_3 = arith.constant 0 : index
    %3 = vector.load %arg5[%c0, %c0_1, %c0_2, %c0_3] : memref<1x13x8x128xf32, #tpu.memory_space<vmem>>, vector<1x1x8x128xf32>
    %4 = vector.shape_cast %3 : vector<1x1x8x128xf32> to vector<8x128xf32>
    %5 = vector.shape_cast %2#0 : vector<8x128xf32> to vector<1x1x8x128xf32>
    tpu.vector_store %arg5[%c0, %c0_1, %c0_2, %c0_3], %5 {strides = array<i32>} : memref<1x13x8x128xf32, #tpu.memory_space<vmem>>, vector<1x1x8x128xf32>,
    %c0_4 = arith.constant 0 : index
    %c4 = arith.constant 4 : index
    %c0_5 = arith.constant 0 : index
    %c0_6 = arith.constant 0 : index
    %6 = vector.load %arg5[%c0_4, %c4, %c0_5, %c0_6] : memref<1x13x8x128xf32, #tpu.memory_space<vmem>>, vector<1x1x8x128xf32>
    %7 = vector.shape_cast %6 : vector<1x1x8x128xf32> to vector<8x128xf32>
    %8 = vector.shape_cast %2#4 : vector<8x128xf32> to vector<1x1x8x128xf32>
    tpu.vector_store %arg5[%c0_4, %c4, %c0_5, %c0_6], %8 {strides = array<i32>} : memref<1x13x8x128xf32, #tpu.memory_space<vmem>>, vector<1x1x8x128xf32>,
    %c0_7 = arith.constant 0 : index
    %c8 = arith.constant 8 : index
    %c0_8 = arith.constant 0 : index
    %c0_9 = arith.constant 0 : index
    %9 = vector.load %arg5[%c0_7, %c8, %c0_8, %c0_9] : memref<1x13x8x128xf32, #tpu.memory_space<vmem>>, vector<1x1x8x128xf32>
    %10 = vector.shape_cast %9 : vector<1x1x8x128xf32> to vector<8x128xf32>
    %11 = vector.shape_cast %2#8 : vector<8x128xf32> to vector<1x1x8x128xf32>
    tpu.vector_store %arg5[%c0_7, %c8, %c0_8, %c0_9], %11 {strides = array<i32>} : memref<1x13x8x128xf32, #tpu.memory_space<vmem>>, vector<1x1x8x128xf32>,
    %c0_10 = arith.constant 0 : index
    %c1 = arith.constant 1 : index
    %c0_11 = arith.constant 0 : index
    %c0_12 = arith.constant 0 : index
    %12 = vector.load %arg5[%c0_10, %c1, %c0_11, %c0_12] : memref<1x13x8x128xf32, #tpu.memory_space<vmem>>, vector<1x1x8x128xf32>
    %13 = vector.shape_cast %12 : vector<1x1x8x128xf32> to vector<8x128xf32>
    %14 = vector.shape_cast %2#1 : vector<8x128xf32> to vector<1x1x8x128xf32>
    tpu.vector_store %arg5[%c0_10, %c1, %c0_11, %c0_12], %14 {strides = array<i32>} : memref<1x13x8x128xf32, #tpu.memory_space<vmem>>, vector<1x1x8x128xf32>,
    %c0_13 = arith.constant 0 : index
    %c5 = arith.constant 5 : index
    %c0_14 = arith.constant 0 : index
    %c0_15 = arith.constant 0 : index
    %15 = vector.load %arg5[%c0_13, %c5, %c0_14, %c0_15] : memref<1x13x8x128xf32, #tpu.memory_space<vmem>>, vector<1x1x8x128xf32>
    %16 = vector.shape_cast %15 : vector<1x1x8x128xf32> to vector<8x128xf32>
    %17 = vector.shape_cast %2#5 : vector<8x128xf32> to vector<1x1x8x128xf32>
    tpu.vector_store %arg5[%c0_13, %c5, %c0_14, %c0_15], %17 {strides = array<i32>} : memref<1x13x8x128xf32, #tpu.memory_space<vmem>>, vector<1x1x8x128xf32>,
    %c0_16 = arith.constant 0 : index
    %c9 = arith.constant 9 : index
    %c0_17 = arith.constant 0 : index
    %c0_18 = arith.constant 0 : index
    %18 = vector.load %arg5[%c0_16, %c9, %c0_17, %c0_18] : memref<1x13x8x128xf32, #tpu.memory_space<vmem>>, vector<1x1x8x128xf32>
    %19 = vector.shape_cast %18 : vector<1x1x8x128xf32> to vector<8x128xf32>
    %20 = vector.shape_cast %2#9 : vector<8x128xf32> to vector<1x1x8x128xf32>
    tpu.vector_store %arg5[%c0_16, %c9, %c0_17, %c0_18], %20 {strides = array<i32>} : memref<1x13x8x128xf32, #tpu.memory_space<vmem>>, vector<1x1x8x128xf32>,
    %c0_19 = arith.constant 0 : index
    %c2 = arith.constant 2 : index
    %c0_20 = arith.constant 0 : index
    %c0_21 = arith.constant 0 : index
    %21 = vector.load %arg5[%c0_19, %c2, %c0_20, %c0_21] : memref<1x13x8x128xf32, #tpu.memory_space<vmem>>, vector<1x1x8x128xf32>
    %22 = vector.shape_cast %21 : vector<1x1x8x128xf32> to vector<8x128xf32>
    %23 = vector.shape_cast %2#2 : vector<8x128xf32> to vector<1x1x8x128xf32>
    tpu.vector_store %arg5[%c0_19, %c2, %c0_20, %c0_21], %23 {strides = array<i32>} : memref<1x13x8x128xf32, #tpu.memory_space<vmem>>, vector<1x1x8x128xf32>,
    %c0_22 = arith.constant 0 : index
    %c6 = arith.constant 6 : index
    %c0_23 = arith.constant 0 : index
    %c0_24 = arith.constant 0 : index
    %24 = vector.load %arg5[%c0_22, %c6, %c0_23, %c0_24] : memref<1x13x8x128xf32, #tpu.memory_space<vmem>>, vector<1x1x8x128xf32>
    %25 = vector.shape_cast %24 : vector<1x1x8x128xf32> to vector<8x128xf32>
    %26 = vector.shape_cast %2#6 : vector<8x128xf32> to vector<1x1x8x128xf32>
    tpu.vector_store %arg5[%c0_22, %c6, %c0_23, %c0_24], %26 {strides = array<i32>} : memref<1x13x8x128xf32, #tpu.memory_space<vmem>>, vector<1x1x8x128xf32>,
    %c0_25 = arith.constant 0 : index
    %c10 = arith.constant 10 : index
    %c0_26 = arith.constant 0 : index
    %c0_27 = arith.constant 0 : index
    %27 = vector.load %arg5[%c0_25, %c10, %c0_26, %c0_27] : memref<1x13x8x128xf32, #tpu.memory_space<vmem>>, vector<1x1x8x128xf32>
    %28 = vector.shape_cast %27 : vector<1x1x8x128xf32> to vector<8x128xf32>
    %29 = vector.shape_cast %2#10 : vector<8x128xf32> to vector<1x1x8x128xf32>
    tpu.vector_store %arg5[%c0_25, %c10, %c0_26, %c0_27], %29 {strides = array<i32>} : memref<1x13x8x128xf32, #tpu.memory_space<vmem>>, vector<1x1x8x128xf32>,
    %c0_28 = arith.constant 0 : index
    %c3 = arith.constant 3 : index
    %c0_29 = arith.constant 0 : index
    %c0_30 = arith.constant 0 : index
    %30 = vector.load %arg5[%c0_28, %c3, %c0_29, %c0_30] : memref<1x13x8x128xf32, #tpu.memory_space<vmem>>, vector<1x1x8x128xf32>
    %31 = vector.shape_cast %30 : vector<1x1x8x128xf32> to vector<8x128xf32>
    %32 = vector.shape_cast %2#3 : vector<8x128xf32> to vector<1x1x8x128xf32>
    tpu.vector_store %arg5[%c0_28, %c3, %c0_29, %c0_30], %32 {strides = array<i32>} : memref<1x13x8x128xf32, #tpu.memory_space<vmem>>, vector<1x1x8x128xf32>,
    %c0_31 = arith.constant 0 : index
    %c7 = arith.constant 7 : index
    %c0_32 = arith.constant 0 : index
    %c0_33 = arith.constant 0 : index
    %33 = vector.load %arg5[%c0_31, %c7, %c0_32, %c0_33] : memref<1x13x8x128xf32, #tpu.memory_space<vmem>>, vector<1x1x8x128xf32>
    %34 = vector.shape_cast %33 : vector<1x1x8x128xf32> to vector<8x128xf32>
    %35 = vector.shape_cast %2#7 : vector<8x128xf32> to vector<1x1x8x128xf32>
    tpu.vector_store %arg5[%c0_31, %c7, %c0_32, %c0_33], %35 {strides = array<i32>} : memref<1x13x8x128xf32, #tpu.memory_space<vmem>>, vector<1x1x8x128xf32>,
    %c0_34 = arith.constant 0 : index
    %c11 = arith.constant 11 : index
    %c0_35 = arith.constant 0 : index
    %c0_36 = arith.constant 0 : index
    %36 = vector.load %arg5[%c0_34, %c11, %c0_35, %c0_36] : memref<1x13x8x128xf32, #tpu.memory_space<vmem>>, vector<1x1x8x128xf32>
    %37 = vector.shape_cast %36 : vector<1x1x8x128xf32> to vector<8x128xf32>
    %38 = vector.shape_cast %2#11 : vector<8x128xf32> to vector<1x1x8x128xf32>
    tpu.vector_store %arg5[%c0_34, %c11, %c0_35, %c0_36], %38 {strides = array<i32>} : memref<1x13x8x128xf32, #tpu.memory_space<vmem>>, vector<1x1x8x128xf32>,
    %c0_37 = arith.constant 0 : index
    %c12 = arith.constant 12 : index
    %c0_38 = arith.constant 0 : index
    %c0_39 = arith.constant 0 : index
    %39 = vector.load %arg5[%c0_37, %c12, %c0_38, %c0_39] : memref<1x13x8x128xf32, #tpu.memory_space<vmem>>, vector<1x1x8x128xf32>
    %40 = vector.shape_cast %39 : vector<1x1x8x128xf32> to vector<8x128xf32>
    %41 = vector.shape_cast %2#12 : vector<8x128xf32> to vector<1x1x8x128xf32>
    tpu.vector_store %arg5[%c0_37, %c12, %c0_38, %c0_39], %41 {strides = array<i32>} : memref<1x13x8x128xf32, #tpu.memory_space<vmem>>, vector<1x1x8x128xf32>,
    return
  }
  func.func @transform_0(%arg0: i32, %arg1: i32) -> (i32, i32, i32, i32) {
    %c0_i32 = arith.constant 0 : i32
    %c0_i32_0 = arith.constant 0 : i32
    %c0_i32_1 = arith.constant 0 : i32
    return %arg0, %c0_i32, %arg1, %c0_i32_0 : i32, i32, i32, i32
  }
  func.func @transform_1(%arg0: i32, %arg1: i32) -> (i32, i32, i32, i32) {
    %c0_i32 = arith.constant 0 : i32
    %c0_i32_0 = arith.constant 0 : i32
    %c0_i32_1 = arith.constant 0 : i32
    return %arg0, %c0_i32, %arg1, %c0_i32_0 : i32, i32, i32, i32
  }
  func.func @transform_2(%arg0: i32, %arg1: i32) -> (i32, i32, i32, i32) {
    %c0_i32 = arith.constant 0 : i32
    %c0_i32_0 = arith.constant 0 : i32
    %c0_i32_1 = arith.constant 0 : i32
    return %arg0, %c0_i32, %arg1, %c0_i32_0 : i32, i32, i32, i32
  }
  func.func @transform_3(%arg0: i32, %arg1: i32) -> (i32, i32, i32, i32) {
    %c3_i32 = arith.constant 3 : i32
    %0 = arith.muli %arg0, %c3_i32 : i32
    %1 = arith.addi %0, %arg1 : i32
    %c0_i32 = arith.constant 0 : i32
    %c0_i32_0 = arith.constant 0 : i32
    %c0_i32_1 = arith.constant 0 : i32
    %c0_i32_2 = arith.constant 0 : i32
    return %1, %c0_i32, %c0_i32_0, %c0_i32_1 : i32, i32, i32, i32
  }
}

</mosaic_0001>

<llo_original>
// kernel: tpu_custom_call.1
$region0: #{tpu_custom_call.1}
  #allocation0 [shape = 'u32[]', space=smem, size = 0x4, offset = 0x4, fixed_abs, tag = 'smem constant byte address 0x4 - core index']
  #allocation1 [shape = 'u32[144,128]{1,0:T(1,128)}', space=vmem, size = 0x12000, scoped, tag = 'internal scratch']
  #allocation9 [shape = 's32[]', space=sflag, size = 0x4, offset = 0, fixed_abs, tag = 'sflag constant byte address 0x0 - dummy sync flag']
  #allocation11 [shape = 's32[]', space=sflag, size = 0x4, offset = 0, fixed_abs, tag = 'sflag constant byte address 0x0 - dummy sync flag']
  %s0 = inlined_call_operand.hbm [shape: f32[2,4,48,128], index: 0, kind: input, shape index: {}]
  %s1 = inlined_call_operand.hbm [shape: s32[2,1,48,128], index: 1, kind: input, shape index: {}]
  %s2 = inlined_call_operand.hbm [shape: f32[2,3,48,128], index: 2, kind: input, shape index: {}]
  %s3 = inlined_call_operand.hbm [shape: f32[6,13,8,128], index: 3, kind: output, shape index: {}]
  %s4 = sld [smem:[#allocation0]]
  $region64: #{tpu_custom_call.1} parent=0
    _
  %s6 = ssub.s32 1, %s4
  %s7 = scalar_select 0, %s6, %s4
  $region1: #{tpu_custom_call.1} parent=0
    #allocation2 [shape = 'u8[65536]{0}', space=vmem, size = 0x10000, scoped, tag = 'input window, operand 0']
    #allocation3 [shape = 's32[2]{0}', space=sflag, size = 0x8, scoped, tag = 'scoped memory for tpu_custom_call.1']
    #allocation4 [shape = 's32[2]{0}', space=sflag, size = 0x8, scoped, tag = 'scoped memory for tpu_custom_call.1']
    #allocation5 [shape = 'u8[16384]{0}', space=vmem, size = 0x4000, scoped, tag = 'input window, operand 1']
    #allocation6 [shape = 's32[2]{0}', space=sflag, size = 0x8, scoped, tag = 'scoped memory for tpu_custom_call.1']
    #allocation7 [shape = 'u8[49152]{0}', space=vmem, size = 0xc000, scoped, tag = 'input window, operand 2']
    #allocation8 [shape = 'u8[106496]{0}', space=vmem, size = 0x1a000, scoped, tag = 'output window, operand 0']
    %8 = vsyncpa [#allocation3], 0
    %s9 = scalar_lea.sflag [#allocation3], 1
    %10 = vsyncpa %s9, 0
    %11 = vsyncpa [#allocation6], 0
    %s12 = scalar_lea.sflag [#allocation6], 1
    %13 = vsyncpa %s12, 0
    %14 = vsyncpa [#allocation4], 0
    %s15 = scalar_lea.sflag [#allocation4], 1
    %16 = vsyncpa %s15, 0
    loop: start=0, step=1, limit=8
    $region2: #{tpu_custom_call.1} parent=1 // loop_pre_header
      _
    $region3: #{tpu_custom_call.1} parent=1 // loop_header
      %s18 = sphi 0, %s22
      %p19 = scmp.ge.s32.totalorder %s18, 8
      %s25 = sphi 0, %s37
      %s26 = sphi 0, %s33
      %s27 = sphi 0, %s25
      %s28 = sphi 0, %s26
      %s29 = sphi 0, %s27
      %s30 = sphi 0, %s28
      %s42 = sphi 0, %s44
      %s45 = sphi 0, %s42
      %s46 = sphi 0, %s45
      %s62 = sphi 0, %s46
      %s70 = sphi 0, %s72
      %s73 = sphi 0, %s70
      %s74 = sphi 0, %s73
      %s90 = sphi 0, %s74
      %s98 = sphi 0, %s100
      %s101 = sphi 0, %s98
      %s102 = sphi 0, %s101
      %s118 = sphi 0, %s102
      %s128 = sphi 0, %s130
      %s131 = sphi 0, %s128
      %s132 = sphi 0, %s131
      %s148 = sphi 0, %s132
    $region4: #{tpu_custom_call.1} parent=1 // loop_header_branch
      %21 = sbr.rel (%p19) target = $region8
    $region5: #{tpu_custom_call.1} parent=1 // loop_body
      %s23 = ssub.s32 %s18, 1
      %s24 = ssub.s32 %s18, 2
      %s31 = sadd.s32 1, %s26
      %p32 = scmp.ge.s32.totalorder %s31, 3
      %s33 = scalar_select %p32, 0, %s31
      %s34 = sadd.s32 1, %s25
      %s35 = scalar_select %p32, %s34, %s25
      %p36 = scmp.ge.s32.totalorder %s35, 2
      %s37 = scalar_select %p36, 0, %s35
      %s38 = ssub.s32 %s25, %s37
      %s39 = ssub.s32 %s26, %s33
      %s40 = sor.u32 %s38, %s39
      %p41 = scmp.eq.s32.totalorder %s40, 0
      %s43 = sadd.s32 %s42, 1
      %s44 = scalar_select %p41, %s42, %s43
      %p47 = pneg %p41
      %p48 = scmp.eq.s32.totalorder %s18, 5
      %p49 = por %p47, %p48
      %p50 = scmp.ne.s32.totalorder %s42, %s45
      %p51 = scmp.eq.s32.totalorder %s18, 0
      %p52 = por %p50, %p51
      %p53 = scmp.ne.s32.totalorder %s42, %s45
      %p54 = scmp.eq.s32.totalorder %s23, 5
      %p55 = por %p53, %p54
      %p56 = scmp.ne.s32.totalorder %s45, %s46
      %p57 = scmp.eq.s32.totalorder %s23, 0
      %p58 = por %p56, %p57
      %p59 = scmp.ne.s32.totalorder %s45, %s46
      %p60 = scmp.eq.s32.totalorder %s24, 5
      %p61 = por %p59, %p60
      %p63 = scmp.ne.s32.totalorder %s46, %s62
      %p64 = scmp.eq.s32.totalorder %s24, 0
      %p65 = por %p63, %p64
      %s66 = ssub.s32 %s25, %s37
      %s67 = ssub.s32 %s26, %s33
      %s68 = sor.u32 %s66, %s67
      %p69 = scmp.eq.s32.totalorder %s68, 0
      %s71 = sadd.s32 %s70, 1
      %s72 = scalar_select %p69, %s70, %s71
      %p75 = pneg %p69
      %p76 = scmp.eq.s32.totalorder %s18, 5
      %p77 = por %p75, %p76
      %p78 = scmp.ne.s32.totalorder %s70, %s73
      %p79 = scmp.eq.s32.totalorder %s18, 0
      %p80 = por %p78, %p79
      %p81 = scmp.ne.s32.totalorder %s70, %s73
      %p82 = scmp.eq.s32.totalorder %s23, 5
      %p83 = por %p81, %p82
      %p84 = scmp.ne.s32.totalorder %s73, %s74
      %p85 = scmp.eq.s32.totalorder %s23, 0
      %p86 = por %p84, %p85
      %p87 = scmp.ne.s32.totalorder %s73, %s74
      %p88 = scmp.eq.s32.totalorder %s24, 5
      %p89 = por %p87, %p88
      %p91 = scmp.ne.s32.totalorder %s74, %s90
      %p92 = scmp.eq.s32.totalorder %s24, 0
      %p93 = por %p91, %p92
      %s94 = ssub.s32 %s25, %s37
      %s95 = ssub.s32 %s26, %s33
      %s96 = sor.u32 %s94, %s95
      %p97 = scmp.eq.s32.totalorder %s96, 0
      %s99 = sadd.s32 %s98, 1
      %s100 = scalar_select %p97, %s98, %s99
      %p103 = pneg %p97
      %p104 = scmp.eq.s32.totalorder %s18, 5
      %p105 = por %p103, %p104
      %p106 = scmp.ne.s32.totalorder %s98, %s101
      %p107 = scmp.eq.s32.totalorder %s18, 0
      %p108 = por %p106, %p107
      %p109 = scmp.ne.s32.totalorder %s98, %s101
      %p110 = scmp.eq.s32.totalorder %s23, 5
      %p111 = por %p109, %p110
      %p112 = scmp.ne.s32.totalorder %s101, %s102
      %p113 = scmp.eq.s32.totalorder %s23, 0
      %p114 = por %p112, %p113
      %p115 = scmp.ne.s32.totalorder %s101, %s102
      %p116 = scmp.eq.s32.totalorder %s24, 5
      %p117 = por %p115, %p116
      %p119 = scmp.ne.s32.totalorder %s102, %s118
      %p120 = scmp.eq.s32.totalorder %s24, 0
      %p121 = por %p119, %p120
      %s122 = smul.u32 %s25, 3
      %s123 = sadd.s32 %s122, %s26
      %s124 = smul.u32 %s37, 3
      %s125 = sadd.s32 %s124, %s33
      %s126 = ssub.s32 %s123, %s125
      %p127 = scmp.eq.s32.totalorder %s126, 0
      %s129 = sadd.s32 %s128, 1
      %s130 = scalar_select %p127, %s128, %s129
      %p133 = pneg %p127
      %p134 = scmp.eq.s32.totalorder %s18, 5
      %p135 = por %p133, %p134
      %p136 = scmp.ne.s32.totalorder %s128, %s131
      %p137 = scmp.eq.s32.totalorder %s18, 0
      %p138 = por %p136, %p137
      %p139 = scmp.ne.s32.totalorder %s128, %s131
      %p140 = scmp.eq.s32.totalorder %s23, 5
      %p141 = por %p139, %p140
      %p142 = scmp.ne.s32.totalorder %s131, %s132
      %p143 = scmp.eq.s32.totalorder %s23, 0
      %p144 = por %p142, %p143
      %p145 = scmp.ne.s32.totalorder %s131, %s132
      %p146 = scmp.eq.s32.totalorder %s24, 5
      %p147 = por %p145, %p146
      %p149 = scmp.ne.s32.totalorder %s132, %s148
      %p150 = scmp.eq.s32.totalorder %s24, 0
      %p151 = por %p149, %p150
      %p152 = scmp.le.s32.totalorder 1, %s18
      %p153 = scmp.lt.s32.totalorder %s18, 7
      %p154 = pnand %p152, %p153
      %p155 = pneg %p154
      // Predicated region
      $region9: #{tpu_custom_call.1} parent=5 // pred_check
        _
      $region10: #{tpu_custom_call.1} parent=5 // pred_check_branch
        %157 = sbr.rel (%p154) target = $region12
      $region11: #{tpu_custom_call.1} parent=5 // pred_region
        %s158 = ssub.s32 %s18, 1
      $region12: #{tpu_custom_call.1} parent=5 // pred_fallthru
        _
      %p159 = scmp.lt.s32.totalorder %s18, 6
      // Predicated region
      $region13: #{tpu_custom_call.1} parent=5 // pred_check
        %p160 = pneg %p159
      $region14: #{tpu_custom_call.1} parent=5 // pred_check_branch
        %162 = sbr.rel (%p160) target = $region16
      $region15: #{tpu_custom_call.1} parent=5 // pred_region
        // Predicated region
        $region17: #{tpu_custom_call.1} parent=15 // pred_check
          %p163 = pneg %p52
        $region18: #{tpu_custom_call.1} parent=15 // pred_check_branch
          %165 = sbr.rel (%p163) target = $region20
        $region19: #{tpu_custom_call.1} parent=15 // pred_region
          #allocation10 [shape = 'u32[6]{0}', space=smem, size = 0x18, scoped, tag = 'DMA stride descriptor']
          %s166 = sand.u32 %s42, 1
          %s167 = scalar_lea.sflag [#allocation3], %s166
          %s168 = sand.u32 %s42, 1
          %s169 = smul.addr %s168, 64
          %s170 = scalar_lea.vmem [#allocation2], %s169
          %s171 = smul.u32 2, %s26
          %s173 = ssub.s32 1024, 1024
          %174 = vsyncadd %s167, %s173
          %s175 = smul.addr %s25, 24
          %s176 = sadd.s32 %s171, %s175
          %s177 = smul.addr %s176, 128
          %s178 = scalar_lea.hbm %s0, %s177
          %s180 = sshll.u32 1, 14
          %s181 = sxor.u32 4294967295, %s180
          %s183 = sld [smem:[#allocation0]]
          %s184 = sadd.s32 2, %s183
          %s186 = sshll.u32 7, 26
          %s187 = sxor.u32 4294967295, %s186
          %s188 = sand.u32 0, %s187
          %s189 = sshll.u32 %s184, 26
          %s190 = sor.u32 %s188, %s189
          %s191 = sshll.u32 %s170, 4
          %s192 = int_to_ptr.vmem [resolvable:$true] %s191
          %198 = sst [smem:[#allocation10]] 768
          %s199 = scalar_lea.smem [#allocation10], 1
          %200 = sst [smem:[%s199]] 256
          %s201 = scalar_lea.smem [#allocation10], 2
          %202 = sst [smem:[%s201]] 2
          %s203 = scalar_lea.smem [#allocation10], 3
          %204 = sst [smem:[%s203]] 128
          %s205 = scalar_lea.smem [#allocation10], 4
          %206 = sst [smem:[%s205]] 128
          %s207 = scalar_lea.smem [#allocation10], 5
          %208 = sst [smem:[%s207]] 8
          %210 = dma.general %s178, 1024, %s192, %s167, [#allocation9], [#allocation10], %s190, 0
        $region20: #{tpu_custom_call.1} parent=15 // pred_fallthru
          _
        // Predicated region
        $region21: #{tpu_custom_call.1} parent=15 // pred_check
          %p211 = pneg %p80
        $region22: #{tpu_custom_call.1} parent=15 // pred_check_branch
          %213 = sbr.rel (%p211) target = $region24
        $region23: #{tpu_custom_call.1} parent=15 // pred_region
          %s214 = sand.u32 %s18, 1
          %s215 = scalar_lea.sflag [#allocation6], %s214
          %s216 = sand.u32 %s70, 1
          %s217 = smul.addr %s216, 16
          %s218 = scalar_lea.vmem [#allocation5], %s217
          %s219 = smul.u32 2, %s26
          %s221 = ssub.s32 256, 256
          %222 = vsyncadd %s215, %s221
          %s223 = smul.addr %s25, 6
          %s224 = sadd.s32 %s219, %s223
          %s225 = smul.addr %s224, 128
          %s226 = scalar_lea.hbm %s1, %s225
          %s227 = sshll.u32 %s218, 4
          %s228 = int_to_ptr.vmem [resolvable:$true] %s227
          %233 = dma.hbm_to_vmem [thread:$0]  %s226, 256, %s228, %s215, 128, 128, 8
        $region24: #{tpu_custom_call.1} parent=15 // pred_fallthru
          _
        // Predicated region
        $region25: #{tpu_custom_call.1} parent=15 // pred_check
          %p234 = pneg %p108
        $region26: #{tpu_custom_call.1} parent=15 // pred_check_branch
          %236 = sbr.rel (%p234) target = $region28
        $region27: #{tpu_custom_call.1} parent=15 // pred_region
          #allocation12 [shape = 'u32[6]{0}', space=smem, size = 0x18, scoped, tag = 'DMA stride descriptor']
          %s237 = sand.u32 %s18, 1
          %s238 = scalar_lea.sflag [#allocation6], %s237
          %s239 = sand.u32 %s98, 1
          %s240 = smul.addr %s239, 48
          %s241 = scalar_lea.vmem [#allocation7], %s240
          %s242 = smul.u32 2, %s26
          %s244 = ssub.s32 768, 768
          %245 = vsyncadd %s238, %s244
          %s246 = smul.addr %s25, 18
          %s247 = sadd.s32 %s242, %s246
          %s248 = smul.addr %s247, 128
          %s249 = scalar_lea.hbm %s2, %s248
          %s251 = sshll.u32 1, 14
          %s252 = sxor.u32 4294967295, %s251
          %s254 = sld [smem:[#allocation0]]
          %s255 = sadd.s32 2, %s254
          %s257 = sshll.u32 7, 26
          %s258 = sxor.u32 4294967295, %s257
          %s259 = sand.u32 0, %s258
          %s260 = sshll.u32 %s255, 26
          %s261 = sor.u32 %s259, %s260
          %s262 = sshll.u32 %s241, 4
          %s263 = int_to_ptr.vmem [resolvable:$true] %s262
          %269 = sst [smem:[#allocation12]] 768
          %s270 = scalar_lea.smem [#allocation12], 1
          %271 = sst [smem:[%s270]] 256
          %s272 = scalar_lea.smem [#allocation12], 2
          %273 = sst [smem:[%s272]] 2
          %s274 = scalar_lea.smem [#allocation12], 3
          %275 = sst [smem:[%s274]] 128
          %s276 = scalar_lea.smem [#allocation12], 4
          %277 = sst [smem:[%s276]] 128
          %s278 = scalar_lea.smem [#allocation12], 5
          %279 = sst [smem:[%s278]] 8
          %281 = dma.general %s249, 768, %s263, %s238, [#allocation11], [#allocation12], %s261, 0
        $region28: #{tpu_custom_call.1} parent=15 // pred_fallthru
          _
      $region16: #{tpu_custom_call.1} parent=5 // pred_fallthru
        _
      %p282 = scmp.le.s32.totalorder 1, %s18
      %p283 = scmp.lt.s32.totalorder %s18, 7
      %p284 = pnand %p282, %p283
      %p285 = pneg %p284
      // Predicated region
      $region29: #{tpu_custom_call.1} parent=5 // pred_check
        _
      $region30: #{tpu_custom_call.1} parent=5 // pred_check_branch
        %287 = sbr.rel (%p284) target = $region32
      $region31: #{tpu_custom_call.1} parent=5 // pred_region
        %s288 = ssub.s32 %s18, 1
        %s289 = sand.u32 %s45, 1
        %s290 = scalar_lea.sflag [#allocation3], %s289
        %s291 = sand.u32 %s45, 1
        %s292 = smul.addr %s291, 64
        %s293 = scalar_lea.vmem [#allocation2], %s292
        // Predicated region
        $region33: #{tpu_custom_call.1} parent=31 // pred_check
          %p294 = pneg %p58
        $region34: #{tpu_custom_call.1} parent=31 // pred_check_branch
          %296 = sbr.rel (%p294) target = $region36
        $region35: #{tpu_custom_call.1} parent=31 // pred_region
          %297 = dma.done %s290, 1024
        $region36: #{tpu_custom_call.1} parent=31 // pred_fallthru
          _
        %s298 = sand.u32 %s23, 1
        %s299 = scalar_lea.sflag [#allocation6], %s298
        %s300 = sand.u32 %s73, 1
        %s301 = smul.addr %s300, 16
        %s302 = scalar_lea.vmem [#allocation5], %s301
        // Predicated region
        $region37: #{tpu_custom_call.1} parent=31 // pred_check
          %p303 = pneg %p86
        $region38: #{tpu_custom_call.1} parent=31 // pred_check_branch
          %305 = sbr.rel (%p303) target = $region40
        $region39: #{tpu_custom_call.1} parent=31 // pred_region
          %306 = dma.done %s299, 256
        $region40: #{tpu_custom_call.1} parent=31 // pred_fallthru
          _
        %s307 = sand.u32 %s23, 1
        %s308 = scalar_lea.sflag [#allocation6], %s307
        %s309 = sand.u32 %s101, 1
        %s310 = smul.addr %s309, 48
        %s311 = scalar_lea.vmem [#allocation7], %s310
        // Predicated region
        $region41: #{tpu_custom_call.1} parent=31 // pred_check
          %p312 = pneg %p114
        $region42: #{tpu_custom_call.1} parent=31 // pred_check_branch
          %314 = sbr.rel (%p312) target = $region44
        $region43: #{tpu_custom_call.1} parent=31 // pred_region
          %315 = dma.done %s308, 768
        $region44: #{tpu_custom_call.1} parent=31 // pred_fallthru
          _
        %s316 = sand.u32 %s45, 1
        %s317 = scalar_lea.sflag [#allocation3], %s316
        %s318 = sand.u32 %s45, 1
        %s319 = smul.addr %s318, 64
        %s320 = scalar_lea.vmem [#allocation2], %s319
        %p321 = pneg %p58
        %p322 = pneg %p55
        %s323 = sand.u32 %s23, 1
        %s324 = scalar_lea.sflag [#allocation6], %s323
        %s325 = sand.u32 %s73, 1
        %s326 = smul.addr %s325, 16
        %s327 = scalar_lea.vmem [#allocation5], %s326
        %p328 = pneg %p86
        %p329 = pneg %p83
        %s330 = sand.u32 %s23, 1
        %s331 = scalar_lea.sflag [#allocation6], %s330
        %s332 = sand.u32 %s101, 1
        %s333 = smul.addr %s332, 48
        %s334 = scalar_lea.vmem [#allocation7], %s333
        %p335 = pneg %p114
        %p336 = pneg %p111
        %p337 = pneg %p144
        %p338 = pneg %p141
        %s339 = sand.u32 %s131, 1
        %s340 = scalar_lea.sflag [#allocation4], %s339
        %s341 = sand.u32 %s131, 1
        %s342 = smul.addr %s341, 104
        %s343 = scalar_lea.vmem [#allocation8], %s342
        %s344 = smul.u32 2, %s28
        %s345 = smul.u32 2, %s28
        %s346 = smul.u32 2, %s28
        %s347 = smul.u32 %s27, 3
        %s348 = sadd.s32 %s347, %s28
        loop: start=0, step=1, limit=2
        $region45: #{tpu_custom_call.1} parent=31 // loop_pre_header
          _
        $region46: #{tpu_custom_call.1} parent=31 // loop_header
          %s350 = sphi 0, %s354
          %p351 = scmp.ge.s32.totalorder %s350, 2
          %v355 = vphi 0.0, %v407
          %v356 = vphi 0.0, %v415
          %v357 = vphi 0.0, %v427
          %v358 = vphi 0.0, %v439
          %v359 = vphi 0.0, %v408
          %v360 = vphi 0.0, %v416
          %v361 = vphi 0.0, %v428
          %v362 = vphi 0.0, %v440
          %v363 = vphi 0.0, %v409
          %v364 = vphi 0.0, %v417
          %v365 = vphi 0.0, %v429
          %v366 = vphi 0.0, %v441
          %v367 = vphi 0.0, %v445
        $region47: #{tpu_custom_call.1} parent=31 // loop_header_branch
          %353 = sbr.rel (%p351) target = $region51
        $region48: #{tpu_custom_call.1} parent=31 // loop_body
          %s368 = smul.u32 %s350, 8
          %s369 = scalar_lea.vmem %s302, %s368 [#allocation5]
          %v370 = vld [vmem:[%s369] sm:$0xff]
          %s371 = scalar_lea.vmem %s293, %s368 [#allocation2]
          %v372 = vld [vmem:[%s371] sm:$0xff]
          %s373 = sadd.s32 %s368, 16
          %s374 = scalar_lea.vmem %s293, %s373 [#allocation2]
          %v375 = vld [vmem:[%s374] sm:$0xff]
          %s376 = sadd.s32 %s368, 32
          %s377 = scalar_lea.vmem %s293, %s376 [#allocation2]
          %v378 = vld [vmem:[%s377] sm:$0xff]
          %s379 = sadd.s32 %s368, 48
          %s380 = scalar_lea.vmem %s293, %s379 [#allocation2]
          %v381 = vld [vmem:[%s380] sm:$0xff]
          %v382 = vmax.f32 %v372, %v375
          %v383 = vmax.f32 %v382, %v378
          %v384 = vmax.f32 %v383, %v381
          %v385 = vsub.f32 %v372, %v384
          %v386 = vmul.f32 %v385, 1.442695
          %v387 = vpow.pop %v386
          %v388 = vsub.f32 %v375, %v384
          %v389 = vmul.f32 %v388, 1.442695
          %v390 = vpow.pop %v389
          %v391 = vsub.f32 %v378, %v384
          %v392 = vmul.f32 %v391, 1.442695
          %v393 = vpow.pop %v392
          %v394 = vsub.f32 %v381, %v384
          %v395 = vmul.f32 %v394, 1.442695
          %v396 = vpow.pop %v395
          %v397 = vadd.f32 %v387, %v390
          %v398 = vadd.f32 %v397, %v393
          %v399 = vadd.f32 %v398, %v396
          %v400 = vrcp.pop %v399
          %v401 = vmul.f32 1.0, %v400
          %v402 = vmul.f32 %v387, %v401
          %vm403 = vcmp.eq.s32.totalorder %v370, 0
          %v404 = vsel %vm403, 1, 0
          %v405 = vcvt.s32.f32 %v404
          %v406 = vmul.f32 %v402, %v405
          %v407 = vadd.f32 %v355, %v406
          %v408 = vadd.f32 %v359, %v402
          %v409 = vadd.f32 %v363, %v405
          %v410 = vmul.f32 %v390, %v401
          %vm411 = vcmp.eq.s32.totalorder %v370, 1
          %v412 = vsel %vm411, 1, 0
          %v413 = vcvt.s32.f32 %v412
          %v414 = vmul.f32 %v410, %v413
          %v415 = vadd.f32 %v356, %v414
          %v416 = vadd.f32 %v360, %v410
          %v417 = vadd.f32 %v364, %v413
          %s418 = scalar_lea.vmem %s311, %s368 [#allocation7]
          %v419 = vld [vmem:[%s418] sm:$0xff]
          %v420 = vmul.f32 %v410, %v419
          %v421 = vadd.f32 %v367, %v420
          %v422 = vmul.f32 %v393, %v401
          %vm423 = vcmp.eq.s32.totalorder %v370, 2
          %v424 = vsel %vm423, 1, 0
          %v425 = vcvt.s32.f32 %v424
          %v426 = vmul.f32 %v422, %v425
          %v427 = vadd.f32 %v357, %v426
          %v428 = vadd.f32 %v361, %v422
          %v429 = vadd.f32 %v365, %v425
          %s430 = scalar_lea.vmem %s311, %s373 [#allocation7]
          %v431 = vld [vmem:[%s430] sm:$0xff]
          %v432 = vmul.f32 %v422, %v431
          %v433 = vadd.f32 %v421, %v432
          %v434 = vmul.f32 %v396, %v401
          %vm435 = vcmp.eq.s32.totalorder %v370, 3
          %v436 = vsel %vm435, 1, 0
          %v437 = vcvt.s32.f32 %v436
          %v438 = vmul.f32 %v434, %v437
          %v439 = vadd.f32 %v358, %v438
          %v440 = vadd.f32 %v362, %v434
          %v441 = vadd.f32 %v366, %v437
          %s442 = scalar_lea.vmem %s311, %s376 [#allocation7]
          %v443 = vld [vmem:[%s442] sm:$0xff]
          %v444 = vmul.f32 %v434, %v443
          %v445 = vadd.f32 %v433, %v444
        $region49: #{tpu_custom_call.1} parent=31 // loop_footer
          %s354 = sadd.s32 1, %s350
        $region50: #{tpu_custom_call.1} parent=31 // loop_footer_branch
          %349 = sbr.rel target = $region46
        $region51: #{tpu_custom_call.1} parent=31 // loop_exit
          _
        %446 = vst [vmem:[%s343] sm:$0xff] %v355
        %s447 = scalar_lea.vmem %s343, 32 [#allocation8]
        %448 = vst [vmem:[%s447] sm:$0xff] %v359
        %s449 = scalar_lea.vmem %s343, 64 [#allocation8]
        %450 = vst [vmem:[%s449] sm:$0xff] %v363
        %s451 = scalar_lea.vmem %s343, 8 [#allocation8]
        %452 = vst [vmem:[%s451] sm:$0xff] %v356
        %s453 = scalar_lea.vmem %s343, 40 [#allocation8]
        %454 = vst [vmem:[%s453] sm:$0xff] %v360
        %s455 = scalar_lea.vmem %s343, 72 [#allocation8]
        %456 = vst [vmem:[%s455] sm:$0xff] %v364
        %s457 = scalar_lea.vmem %s343, 16 [#allocation8]
        %458 = vst [vmem:[%s457] sm:$0xff] %v357
        %s459 = scalar_lea.vmem %s343, 48 [#allocation8]
        %460 = vst [vmem:[%s459] sm:$0xff] %v361
        %s461 = scalar_lea.vmem %s343, 80 [#allocation8]
        %462 = vst [vmem:[%s461] sm:$0xff] %v365
        %s463 = scalar_lea.vmem %s343, 24 [#allocation8]
        %464 = vst [vmem:[%s463] sm:$0xff] %v358
        %s465 = scalar_lea.vmem %s343, 56 [#allocation8]
        %466 = vst [vmem:[%s465] sm:$0xff] %v362
        %s467 = scalar_lea.vmem %s343, 88 [#allocation8]
        %468 = vst [vmem:[%s467] sm:$0xff] %v366
        %s469 = scalar_lea.vmem %s343, 96 [#allocation8]
        %470 = vst [vmem:[%s469] sm:$0xff] %v367
        %s471 = sand.u32 %s131, 1
        %s472 = scalar_lea.sflag [#allocation4], %s471
        %s473 = sand.u32 %s131, 1
        %s474 = smul.addr %s473, 104
        %s475 = scalar_lea.vmem [#allocation8], %s474
        // Predicated region
        $region52: #{tpu_custom_call.1} parent=31 // pred_check
          %p476 = pneg %p141
        $region53: #{tpu_custom_call.1} parent=31 // pred_check_branch
          %478 = sbr.rel (%p476) target = $region55
        $region54: #{tpu_custom_call.1} parent=31 // pred_region
          %s479 = smul.u32 %s27, 3
          %s480 = sadd.s32 %s479, %s28
          %s482 = ssub.s32 1664, 1664
          %483 = vsyncadd %s472, %s482
          %s484 = smul.addr %s480, 13
          %s485 = smul.addr %s484, 128
          %s486 = scalar_lea.hbm %s3, %s485
          %s487 = sshll.u32 %s475, 4
          %s488 = int_to_ptr.vmem [resolvable:$true] %s487
          %493 = dma.vmem_to_hbm [thread:$0]  %s488, 1664, %s486, %s472, 128, 128, 8
        $region55: #{tpu_custom_call.1} parent=31 // pred_fallthru
          _
      $region32: #{tpu_custom_call.1} parent=5 // pred_fallthru
        _
      %p494 = scmp.le.s32.totalorder 2, %s18
      // Predicated region
      $region56: #{tpu_custom_call.1} parent=5 // pred_check
        %p495 = pneg %p494
      $region57: #{tpu_custom_call.1} parent=5 // pred_check_branch
        %497 = sbr.rel (%p495) target = $region59
      $region58: #{tpu_custom_call.1} parent=5 // pred_region
        %s498 = ssub.s32 %s18, 2
        // Predicated region
        $region60: #{tpu_custom_call.1} parent=58 // pred_check
          %p499 = pneg %p147
        $region61: #{tpu_custom_call.1} parent=58 // pred_check_branch
          %501 = sbr.rel (%p499) target = $region63
        $region62: #{tpu_custom_call.1} parent=58 // pred_region
          %s502 = sand.u32 %s132, 1
          %s503 = scalar_lea.sflag [#allocation4], %s502
          %s504 = sand.u32 %s132, 1
          %s505 = smul.addr %s504, 104
          %s506 = scalar_lea.vmem [#allocation8], %s505
          %507 = dma.done %s503, 1664
        $region63: #{tpu_custom_call.1} parent=58 // pred_fallthru
          _
      $region59: #{tpu_custom_call.1} parent=5 // pred_fallthru
        _
    $region6: #{tpu_custom_call.1} parent=1 // loop_footer
      %s22 = sadd.s32 1, %s18
    $region7: #{tpu_custom_call.1} parent=1 // loop_footer_branch
      %17 = sbr.rel target = $region3
    $region8: #{tpu_custom_call.1} parent=1 // loop_exit
      _
    %508 = vsyncpa [#allocation3], 1
    %s509 = scalar_lea.sflag [#allocation3], 1
    %510 = vsyncpa %s509, 1
    %511 = vsyncpa [#allocation6], 1
    %s512 = scalar_lea.sflag [#allocation6], 1
    %513 = vsyncpa %s512, 1
    %514 = vsyncpa [#allocation4], 1
    %s515 = scalar_lea.sflag [#allocation4], 1
    %516 = vsyncpa %s515, 1

</llo_original>
